<compile_context>
chip_gen: v6e
topology: v6e:2x2x1
jax: 0.10.0
libtpu: 0.0.40
codegen_flags: <defaults>
</compile_context>

<pallas_src>
from functools import partial

import jax
import jax.numpy as jnp
from jax import lax
from jax.experimental import pallas as pl
from jax.experimental.pallas import tpu as pltpu

EPS = 1e-5


def _make_kernel(H, W, Cp, C_out, Opad, D, NB):
    HW = H * W
    DW = D * W  # flat-index shift corresponding to an H shift of D rows

    def kernel(x_ref, prm_ref, msk_ref, w_ref, cb_ref, out_ref):
        # x_ref  : (NB, Cp, HW + 2*DW) bf16  halo-padded, channel-padded input
        # prm_ref: (Cp, 8)  f32   columns [s2, b2, s3, b3, 0, 0, 0, 0]
        # msk_ref: (8, HW)  bf16  rows [b2_k0, b2_k2, b3_k0, b3_k2, 0...]
        # w_ref  : (Opad, 6*Cp) bf16 fused conv weight
        # cb_ref : (C_out, 1) f32 fused conv bias
        # out_ref: (NB, C_out, HW) f32
        x = x_ref[...].astype(jnp.float32)                   # (NB, Cp, L)
        prm = prm_ref[...]
        s2 = prm[:, 0:1]
        b2 = prm[:, 1:2]
        s3 = prm[:, 2:3]
        b3 = prm[:, 3:4]

        # BN + ReLU hoisted: once over the whole halo-padded block, then bf16
        # so every downstream elementwise / concat op runs packed.
        y2 = jnp.maximum(x * s2 + b2, 0.0).astype(jnp.bfloat16)
        y3 = jnp.maximum(x * s3 + b3, 0.0).astype(jnp.bfloat16)

        msk = msk_ref[...]                                   # (8, HW) bf16
        m_b2 = (msk[0:1, :], None, msk[1:2, :])               # conv padding masks
        m_b3 = (msk[2:3, :], None, msk[3:4, :])

        rows = []
        # Branch 2: Conv(3,1), dilation (D,1) -> 3 H-shifts == flat shifts k*DW.
        for k in range(3):
            per_img = []
            for i in range(NB):
                t = y2[i, :, k * DW:k * DW + HW]              # (Cp, HW)
                if m_b2[k] is not None:
                    t = t * m_b2[k]                           # zero conv padding
                per_img.append(t)
            rows.append(jnp.concatenate(per_img, axis=1) if NB > 1 else per_img[0])
        # Branch 3: Conv(1,3), dilation (1,D) -> 3 W-shifts of (k-1)*D.
        for k in range(3):
            off = DW + (k - 1) * D
            per_img = []
            for i in range(NB):
                t = y3[i, :, off:off + HW]                    # (Cp, HW)
                if m_b3[k] is not None:
                    t = t * m_b3[k]
                per_img.append(t)
            rows.append(jnp.concatenate(per_img, axis=1) if NB > 1 else per_img[0])

        # Single fused MXU contraction: (Opad, 6*Cp) x (6*Cp, NB*HW).
        a = jnp.concatenate(rows, axis=0)                     # bf16
        res = jnp.dot(w_ref[...], a, preferred_element_type=jnp.float32)
        res = res[:C_out] + cb_ref[...]                       # drop O padding, add bias
        for i in range(NB):                                   # lane-dense stores
            out_ref[i, :, :] = res[:, i * HW:(i + 1) * HW]

    return kernel


@partial(jax.jit, static_argnames=("dilation",))
def acblock_forward(x_nchw, params, dilation):
    N, C, H, W = x_nchw.shape
    D = 2 ** dilation
    Opad, K6 = params['wcat'].shape
    Cp = K6 // 6
    C_out = params['cb'].shape[0]
    HW = H * W
    DW = D * W
    L = HW + 2 * DW

    # Batch NB images per grid step (amortizes the tiny matmul & step overhead).
    NB = 1
    for cand in (8, 4, 2):
        if N % cand == 0:
            NB = cand
            break

    # NCHW stays NCHW: free reshape + zero halo on the flat spatial axis +
    # channel pad to a sublane multiple; streamed as bf16 (BN done in-kernel).
    xf = x_nchw.reshape(N, C, HW)
    xp = jnp.pad(xf, ((0, 0), (0, Cp - C), (DW, DW))).astype(jnp.bfloat16)

    # Spatial boundary masks for the conv zero padding (position-only).
    flat = jnp.arange(HW, dtype=jnp.int32)
    col = flat % W
    masks = jnp.stack([
        flat >= DW,            # branch2 tap k=0
        flat < HW - DW,        # branch2 tap k=2
        col >= D,              # branch3 tap k=0
        col < W - D,           # branch3 tap k=2
    ]).astype(jnp.bfloat16)
    masks = jnp.pad(masks, ((0, 4), (0, 0)))                  # (8, HW)

    kernel = _make_kernel(H, W, Cp, C_out, Opad, D, NB)
    out = pl.pallas_call(
        kernel,
        out_shape=jax.ShapeDtypeStruct((N, C_out, HW), jnp.float32),
        grid_spec=pltpu.PrefetchScalarGridSpec(
            num_scalar_prefetch=0,
            grid=(N // NB,),
            in_specs=[
                pl.BlockSpec((NB, Cp, L), lambda n: (n, 0, 0)),    # x (bf16)
                pl.BlockSpec((Cp, 8), lambda n: (0, 0)),           # packed BN params
                pl.BlockSpec((8, HW), lambda n: (0, 0)),           # boundary masks
                pl.BlockSpec((Opad, K6), lambda n: (0, 0)),        # fused weight
                pl.BlockSpec((C_out, 1), lambda n: (0, 0)),        # fused conv bias
            ],
            out_specs=pl.BlockSpec((NB, C_out, HW), lambda n: (n, 0, 0)),
        ),
        compiler_params=pltpu.CompilerParams(
            dimension_semantics=("parallel",),
        ),
    )(xp, params['prm'], masks, params['wcat'], params['cb'])

    return out.reshape(N, C_out, H, W)   # free reshape back to NCHW


def init_params(key, C, O):
    ks = jax.random.split(key, 12)
    raw = {
        # Conv weights / biases in PyTorch layout (O, C, kh, kw)
        'w2_oihw': jax.random.normal(ks[0], (O, C, 3, 1), jnp.float32) * 0.1,
        'w3_oihw': jax.random.normal(ks[1], (O, C, 1, 3), jnp.float32) * 0.1,
        'cb2': jax.random.normal(ks[2], (O,), jnp.float32) * 0.1,
        'cb3': jax.random.normal(ks[3], (O,), jnp.float32) * 0.1,
        # BatchNorm (inference): gamma, beta, running mean / var, per branch
        'g2': 1.0 + 0.1 * jax.random.normal(ks[4], (C,), jnp.float32),
        'beta2': 0.1 * jax.random.normal(ks[5], (C,), jnp.float32),
        'm2': 0.1 * jax.random.normal(ks[6], (C,), jnp.float32),
        'v2': jax.random.uniform(ks[7], (C,), jnp.float32, 0.5, 1.5),
        'g3': 1.0 + 0.1 * jax.random.normal(ks[8], (C,), jnp.float32),
        'beta3': 0.1 * jax.random.normal(ks[9], (C,), jnp.float32),
        'm3': 0.1 * jax.random.normal(ks[10], (C,), jnp.float32),
        'v3': jax.random.uniform(ks[11], (C,), jnp.float32, 0.5, 1.5),
    }

    Cp = ((C + 7) // 8) * 8
    pad_c = Cp - C
    Opad = ((O + 15) // 16) * 16     # bf16 weight-tile packing (padded rows are zero)

    s2 = raw['g2'] / jnp.sqrt(raw['v2'] + EPS)
    s3 = raw['g3'] / jnp.sqrt(raw['v3'] + EPS)
    sh2 = raw['beta2'] - raw['m2'] * s2
    sh3 = raw['beta3'] - raw['m3'] * s3

    def padc(v):
        return jnp.pad(v, (0, pad_c))

    # Packed per-channel BN params: (Cp, 8) = [s2, b2, s3, b3, 0, 0, 0, 0].
    prm = jnp.stack([padc(s2), padc(sh2), padc(s3), padc(sh3)], axis=1)
    prm = jnp.pad(prm, ((0, 0), (0, 4)))

    # Pre-packed fused conv weight (Opad, 6*Cp):
    #   column t*Cp + c -> branch-2 tap t (t<3) / branch-3 tap t-3, channel c;
    #   pad channels / pad output rows get zero weights.
    w2_otc = jnp.transpose(raw['w2_oihw'][:, :, :, 0], (0, 2, 1))   # (O, 3, C)
    w3_otc = jnp.transpose(raw['w3_oihw'][:, :, 0, :], (0, 2, 1))   # (O, 3, C)
    w_otc = jnp.concatenate([w2_otc, w3_otc], axis=1)               # (O, 6, C)
    w_otc = jnp.pad(w_otc, ((0, 0), (0, 0), (0, pad_c)))            # (O, 6, Cp)
    wcat = w_otc.reshape(O, 6 * Cp)
    wcat = jnp.pad(wcat, ((0, Opad - O), (0, 0))).astype(jnp.bfloat16)

    params = {
        'prm': prm,
        'wcat': wcat,
        'cb': (raw['cb2'] + raw['cb3']).reshape(O, 1),
    }
    return params, raw


def reference(x, raw, dilation):
    """Pure-JAX reference (lax.conv_general_dilated) for validation."""
    D = 2 ** dilation

    def bnrelu(x, g, b, m, v):
        s = g / jnp.sqrt(v + EPS)
        sh = b - m * s
        return jnp.maximum(
            x * s[None, :, None, None] + sh[None, :, None, None], 0.0)

    y2 = bnrelu(x, raw['g2'], raw['beta2'], raw['m2'], raw['v2'])
    y3 = bnrelu(x, raw['g3'], raw['beta3'], raw['m3'], raw['v3'])
    o2 = lax.conv_general_dilated(
        y2, raw['w2_oihw'], window_strides=(1, 1),
        padding=((D, D), (0, 0)), rhs_dilation=(D, 1),
        dimension_numbers=('NCHW', 'OIHW', 'NCHW')) \
        + raw['cb2'][None, :, None, None]
    o3 = lax.conv_general_dilated(
        y3, raw['w3_oihw'], window_strides=(1, 1),
        padding=((0, 0), (D, D)), rhs_dilation=(1, D),
        dimension_numbers=('NCHW', 'OIHW', 'NCHW')) \
        + raw['cb3'][None, :, None, None]
    return o2 + o3


if __name__ == "__main__":
    N, C, O, H, W = 2, 4, 8, 16, 16
    dilation = 1  # D = 2

    key = jax.random.PRNGKey(0)
    kx, kp = jax.random.split(key)
    x = jax.random.normal(kx, (N, C, H, W), jnp.float32)
    params, raw = init_params(kp, C, O)

    out = jax.block_until_ready(acblock_forward(x, params, dilation))
    ref = jax.block_until_ready(reference(x, raw, dilation))

    assert out.shape == (N, O, H, W)
    # bf16 input stream + bf16 taps/weights (f32 accumulation) -> compare with
    # a normalized max-abs-error check (a real tap/mask bug would be >> 0.3).
    err = float(jnp.max(jnp.abs(out - ref)) / (jnp.max(jnp.abs(ref)) + 1e-6))
    assert err < 3e-2, f"mismatch vs JAX reference: normalized max err {err}"

    print("KERNEL_OK")
</pallas_src>

<mosaic_0001>
module attributes {stable_mosaic.version = 11 : i64} {
  func.func @kernel(%arg0: i32, %arg1: memref<2x8x320xbf16, #tpu.memory_space<vmem>>, %arg2: memref<8x8xf32, #tpu.memory_space<vmem>>, %arg3: memref<8x256xbf16, #tpu.memory_space<vmem>>, %arg4: memref<16x48xbf16, #tpu.memory_space<vmem>>, %arg5: memref<8x1xf32, #tpu.memory_space<vmem>>, %arg6: memref<2x8x256xf32, #tpu.memory_space<vmem>>) attributes {dimension_semantics = [#tpu.dimension_semantics<parallel>], iteration_bounds = array<i64: 1>, scalar_prefetch = 0 : i64, scratch_operands = 0 : i64, tpu.core_type = #tpu.core_type<tc>, window_params = [{transform_indices = @transform_0, window_bounds = array<i64: 2, 8, 320>}, {pipeline_mode = #tpu.pipeline_mode<synchronous>, transform_indices = @transform_1, window_bounds = array<i64: 8, 8>}, {pipeline_mode = #tpu.pipeline_mode<synchronous>, transform_indices = @transform_2, window_bounds = array<i64: 8, 256>}, {pipeline_mode = #tpu.pipeline_mode<synchronous>, transform_indices = @transform_3, window_bounds = array<i64: 16, 48>}, {pipeline_mode = #tpu.pipeline_mode<synchronous>, transform_indices = @transform_4, window_bounds = array<i64: 8, 1>}, {transform_indices = @transform_5, window_bounds = array<i64: 2, 8, 256>}]} {
    %c0 = arith.constant 0 : index
    %c0_0 = arith.constant 0 : index
    %c0_1 = arith.constant 0 : index
    %0 = vector.load %arg1[%c0, %c0_0, %c0_1] : memref<2x8x320xbf16, #tpu.memory_space<vmem>>, vector<2x8x320xbf16>
    %1 = arith.extf %0 : vector<2x8x320xbf16> to vector<2x8x320xf32>
    %c0_2 = arith.constant 0 : index
    %c0_3 = arith.constant 0 : index
    %2 = vector.load %arg2[%c0_2, %c0_3] : memref<8x8xf32, #tpu.memory_space<vmem>>, vector<8x8xf32>
    %3 = vector.extract_strided_slice %2 {offsets = [0, 0], sizes = [8, 1], strides = [1, 1]} : vector<8x8xf32> to vector<8x1xf32>
    %4 = vector.extract_strided_slice %2 {offsets = [0, 1], sizes = [8, 1], strides = [1, 1]} : vector<8x8xf32> to vector<8x1xf32>
    %5 = vector.extract_strided_slice %2 {offsets = [0, 2], sizes = [8, 1], strides = [1, 1]} : vector<8x8xf32> to vector<8x1xf32>
    %6 = vector.extract_strided_slice %2 {offsets = [0, 3], sizes = [8, 1], strides = [1, 1]} : vector<8x8xf32> to vector<8x1xf32>
    %7 = vector.shape_cast %3 : vector<8x1xf32> to vector<1x8x1xf32>
    %8 = vector.broadcast %7 : vector<1x8x1xf32> to vector<2x8x320xf32>
    %9 = arith.mulf %1, %8 : vector<2x8x320xf32>
    %10 = vector.shape_cast %4 : vector<8x1xf32> to vector<1x8x1xf32>
    %11 = vector.broadcast %10 : vector<1x8x1xf32> to vector<2x8x320xf32>
    %12 = arith.addf %9, %11 : vector<2x8x320xf32>
    %cst = arith.constant 0.000000e+00 : f32
    %13 = vector.broadcast %cst : f32 to vector<2x8x320xf32>
    %14 = arith.maximumf %12, %13 : vector<2x8x320xf32>
    %15 = arith.truncf %14 : vector<2x8x320xf32> to vector<2x8x320xbf16>
    %16 = vector.shape_cast %5 : vector<8x1xf32> to vector<1x8x1xf32>
    %17 = vector.broadcast %16 : vector<1x8x1xf32> to vector<2x8x320xf32>
    %18 = arith.mulf %1, %17 : vector<2x8x320xf32>
    %19 = vector.shape_cast %6 : vector<8x1xf32> to vector<1x8x1xf32>
    %20 = vector.broadcast %19 : vector<1x8x1xf32> to vector<2x8x320xf32>
    %21 = arith.addf %18, %20 : vector<2x8x320xf32>
    %cst_4 = arith.constant 0.000000e+00 : f32
    %22 = vector.broadcast %cst_4 : f32 to vector<2x8x320xf32>
    %23 = arith.maximumf %21, %22 : vector<2x8x320xf32>
    %24 = arith.truncf %23 : vector<2x8x320xf32> to vector<2x8x320xbf16>
    %c0_5 = arith.constant 0 : index
    %c0_6 = arith.constant 0 : index
    %25 = vector.load %arg3[%c0_5, %c0_6] : memref<8x256xbf16, #tpu.memory_space<vmem>>, vector<8x256xbf16>
    %26 = vector.extract_strided_slice %25 {offsets = [0, 0], sizes = [1, 256], strides = [1, 1]} : vector<8x256xbf16> to vector<1x256xbf16>
    %27 = vector.extract_strided_slice %25 {offsets = [1, 0], sizes = [1, 256], strides = [1, 1]} : vector<8x256xbf16> to vector<1x256xbf16>
    %28 = vector.extract_strided_slice %25 {offsets = [2, 0], sizes = [1, 256], strides = [1, 1]} : vector<8x256xbf16> to vector<1x256xbf16>
    %29 = vector.extract_strided_slice %25 {offsets = [3, 0], sizes = [1, 256], strides = [1, 1]} : vector<8x256xbf16> to vector<1x256xbf16>
    %30 = vector.extract_strided_slice %15 {offsets = [0, 0, 0], sizes = [1, 8, 256], strides = [1, 1, 1]} : vector<2x8x320xbf16> to vector<1x8x256xbf16>
    %31 = vector.shape_cast %30 : vector<1x8x256xbf16> to vector<8x256xbf16>
    %32 = vector.broadcast %26 : vector<1x256xbf16> to vector<8x256xbf16>
    %33 = arith.mulf %31, %32 : vector<8x256xbf16>
    %34 = vector.extract_strided_slice %15 {offsets = [1, 0, 0], sizes = [1, 8, 256], strides = [1, 1, 1]} : vector<2x8x320xbf16> to vector<1x8x256xbf16>
    %35 = vector.shape_cast %34 : vector<1x8x256xbf16> to vector<8x256xbf16>
    %36 = vector.broadcast %26 : vector<1x256xbf16> to vector<8x256xbf16>
    %37 = arith.mulf %35, %36 : vector<8x256xbf16>
    %38 = tpu.concatenate %33, %37 in 1 : vector<8x256xbf16>, vector<8x256xbf16> -> vector<8x512xbf16>
    %39 = vector.extract_strided_slice %15 {offsets = [0, 0, 32], sizes = [1, 8, 256], strides = [1, 1, 1]} : vector<2x8x320xbf16> to vector<1x8x256xbf16>
    %40 = vector.shape_cast %39 : vector<1x8x256xbf16> to vector<8x256xbf16>
    %41 = vector.extract_strided_slice %15 {offsets = [1, 0, 32], sizes = [1, 8, 256], strides = [1, 1, 1]} : vector<2x8x320xbf16> to vector<1x8x256xbf16>
    %42 = vector.shape_cast %41 : vector<1x8x256xbf16> to vector<8x256xbf16>
    %43 = tpu.concatenate %40, %42 in 1 : vector<8x256xbf16>, vector<8x256xbf16> -> vector<8x512xbf16>
    %44 = vector.extract_strided_slice %15 {offsets = [0, 0, 64], sizes = [1, 8, 256], strides = [1, 1, 1]} : vector<2x8x320xbf16> to vector<1x8x256xbf16>
    %45 = vector.shape_cast %44 : vector<1x8x256xbf16> to vector<8x256xbf16>
    %46 = vector.broadcast %27 : vector<1x256xbf16> to vector<8x256xbf16>
    %47 = arith.mulf %45, %46 : vector<8x256xbf16>
    %48 = vector.extract_strided_slice %15 {offsets = [1, 0, 64], sizes = [1, 8, 256], strides = [1, 1, 1]} : vector<2x8x320xbf16> to vector<1x8x256xbf16>
    %49 = vector.shape_cast %48 : vector<1x8x256xbf16> to vector<8x256xbf16>
    %50 = vector.broadcast %27 : vector<1x256xbf16> to vector<8x256xbf16>
    %51 = arith.mulf %49, %50 : vector<8x256xbf16>
    %52 = tpu.concatenate %47, %51 in 1 : vector<8x256xbf16>, vector<8x256xbf16> -> vector<8x512xbf16>
    %53 = vector.extract_strided_slice %24 {offsets = [0, 0, 30], sizes = [1, 8, 256], strides = [1, 1, 1]} : vector<2x8x320xbf16> to vector<1x8x256xbf16>
    %54 = vector.shape_cast %53 : vector<1x8x256xbf16> to vector<8x256xbf16>
    %55 = vector.broadcast %28 : vector<1x256xbf16> to vector<8x256xbf16>
    %56 = arith.mulf %54, %55 : vector<8x256xbf16>
    %57 = vector.extract_strided_slice %24 {offsets = [1, 0, 30], sizes = [1, 8, 256], strides = [1, 1, 1]} : vector<2x8x320xbf16> to vector<1x8x256xbf16>
    %58 = vector.shape_cast %57 : vector<1x8x256xbf16> to vector<8x256xbf16>
    %59 = vector.broadcast %28 : vector<1x256xbf16> to vector<8x256xbf16>
    %60 = arith.mulf %58, %59 : vector<8x256xbf16>
    %61 = tpu.concatenate %56, %60 in 1 : vector<8x256xbf16>, vector<8x256xbf16> -> vector<8x512xbf16>
    %62 = vector.extract_strided_slice %24 {offsets = [0, 0, 32], sizes = [1, 8, 256], strides = [1, 1, 1]} : vector<2x8x320xbf16> to vector<1x8x256xbf16>
    %63 = vector.shape_cast %62 : vector<1x8x256xbf16> to vector<8x256xbf16>
    %64 = vector.extract_strided_slice %24 {offsets = [1, 0, 32], sizes = [1, 8, 256], strides = [1, 1, 1]} : vector<2x8x320xbf16> to vector<1x8x256xbf16>
    %65 = vector.shape_cast %64 : vector<1x8x256xbf16> to vector<8x256xbf16>
    %66 = tpu.concatenate %63, %65 in 1 : vector<8x256xbf16>, vector<8x256xbf16> -> vector<8x512xbf16>
    %67 = vector.extract_strided_slice %24 {offsets = [0, 0, 34], sizes = [1, 8, 256], strides = [1, 1, 1]} : vector<2x8x320xbf16> to vector<1x8x256xbf16>
    %68 = vector.shape_cast %67 : vector<1x8x256xbf16> to vector<8x256xbf16>
    %69 = vector.broadcast %29 : vector<1x256xbf16> to vector<8x256xbf16>
    %70 = arith.mulf %68, %69 : vector<8x256xbf16>
    %71 = vector.extract_strided_slice %24 {offsets = [1, 0, 34], sizes = [1, 8, 256], strides = [1, 1, 1]} : vector<2x8x320xbf16> to vector<1x8x256xbf16>
    %72 = vector.shape_cast %71 : vector<1x8x256xbf16> to vector<8x256xbf16>
    %73 = vector.broadcast %29 : vector<1x256xbf16> to vector<8x256xbf16>
    %74 = arith.mulf %72, %73 : vector<8x256xbf16>
    %75 = tpu.concatenate %70, %74 in 1 : vector<8x256xbf16>, vector<8x256xbf16> -> vector<8x512xbf16>
    %76 = tpu.concatenate %38, %43, %52, %61, %66, %75 in 0 : vector<8x512xbf16>, vector<8x512xbf16>, vector<8x512xbf16>, vector<8x512xbf16>, vector<8x512xbf16>, vector<8x512xbf16> -> vector<48x512xbf16>
    %c0_7 = arith.constant 0 : index
    %c0_8 = arith.constant 0 : index
    %77 = vector.load %arg4[%c0_7, %c0_8] : memref<16x48xbf16, #tpu.memory_space<vmem>>, vector<16x48xbf16>
    %cst_9 = arith.constant dense<0.000000e+00> : vector<16x512xf32>
    %78 = tpu.matmul %77, %76, %cst_9 {dimension_numbers = #tpu.dot_dimension_numbers<[1], [0], [0], [1], [0, 0, 1, 1], [], []>} : vector<16x48xbf16>, vector<48x512xbf16>, vector<16x512xf32> -> vector<16x512xf32>
    %79 = vector.extract_strided_slice %78 {offsets = [0, 0], sizes = [8, 512], strides = [1, 1]} : vector<16x512xf32> to vector<8x512xf32>
    %c0_10 = arith.constant 0 : index
    %c0_11 = arith.constant 0 : index
    %80 = vector.load %arg5[%c0_10, %c0_11] : memref<8x1xf32, #tpu.memory_space<vmem>>, vector<8x1xf32>
    %81 = vector.broadcast %80 : vector<8x1xf32> to vector<8x512xf32>
    %82 = arith.addf %79, %81 : vector<8x512xf32>
    %83 = vector.extract_strided_slice %82 {offsets = [0, 0], sizes = [8, 256], strides = [1, 1]} : vector<8x512xf32> to vector<8x256xf32>
    %c0_12 = arith.constant 0 : index
    %c0_13 = arith.constant 0 : index
    %c0_14 = arith.constant 0 : index
    %84 = vector.load %arg6[%c0_12, %c0_13, %c0_14] : memref<2x8x256xf32, #tpu.memory_space<vmem>>, vector<1x8x256xf32>
    %85 = vector.shape_cast %84 : vector<1x8x256xf32> to vector<8x256xf32>
    %86 = vector.shape_cast %83 : vector<8x256xf32> to vector<1x8x256xf32>
    tpu.vector_store %arg6[%c0_12, %c0_13, %c0_14], %86 {strides = array<i32>} : memref<2x8x256xf32, #tpu.memory_space<vmem>>, vector<1x8x256xf32>,
    %87 = vector.extract_strided_slice %82 {offsets = [0, 256], sizes = [8, 256], strides = [1, 1]} : vector<8x512xf32> to vector<8x256xf32>
    %c1 = arith.constant 1 : index
    %c0_15 = arith.constant 0 : index
    %c0_16 = arith.constant 0 : index
    %88 = vector.load %arg6[%c1, %c0_15, %c0_16] : memref<2x8x256xf32, #tpu.memory_space<vmem>>, vector<1x8x256xf32>
    %89 = vector.shape_cast %88 : vector<1x8x256xf32> to vector<8x256xf32>
    %90 = vector.shape_cast %87 : vector<8x256xf32> to vector<1x8x256xf32>
    tpu.vector_store %arg6[%c1, %c0_15, %c0_16], %90 {strides = array<i32>} : memref<2x8x256xf32, #tpu.memory_space<vmem>>, vector<1x8x256xf32>,
    return
  }
  func.func @transform_0(%arg0: i32) -> (i32, i32, i32) {
    %c0_i32 = arith.constant 0 : i32
    %c0_i32_0 = arith.constant 0 : i32
    %c0_i32_1 = arith.constant 0 : i32
    return %arg0, %c0_i32, %c0_i32_0 : i32, i32, i32
  }
  func.func @transform_1(%arg0: i32) -> (i32, i32) {
    %c0_i32 = arith.constant 0 : i32
    %c0_i32_0 = arith.constant 0 : i32
    %c0_i32_1 = arith.constant 0 : i32
    return %c0_i32, %c0_i32_0 : i32, i32
  }
  func.func @transform_2(%arg0: i32) -> (i32, i32) {
    %c0_i32 = arith.constant 0 : i32
    %c0_i32_0 = arith.constant 0 : i32
    %c0_i32_1 = arith.constant 0 : i32
    return %c0_i32, %c0_i32_0 : i32, i32
  }
  func.func @transform_3(%arg0: i32) -> (i32, i32) {
    %c0_i32 = arith.constant 0 : i32
    %c0_i32_0 = arith.constant 0 : i32
    %c0_i32_1 = arith.constant 0 : i32
    return %c0_i32, %c0_i32_0 : i32, i32
  }
  func.func @transform_4(%arg0: i32) -> (i32, i32) {
    %c0_i32 = arith.constant 0 : i32
    %c0_i32_0 = arith.constant 0 : i32
    %c0_i32_1 = arith.constant 0 : i32
    return %c0_i32, %c0_i32_0 : i32, i32
  }
  func.func @transform_5(%arg0: i32) -> (i32, i32, i32) {
    %c0_i32 = arith.constant 0 : i32
    %c0_i32_0 = arith.constant 0 : i32
    %c0_i32_1 = arith.constant 0 : i32
    return %arg0, %c0_i32, %c0_i32_0 : i32, i32, i32
  }
}

</mosaic_0001>

<llo_original>
// kernel: acblock_forward.1
$region0: #{acblock_forward.1}
  #allocation0 [shape = 'u32[]', space=smem, size = 0x4, offset = 0x4, fixed_abs, tag = 'smem constant byte address 0x4 - core index']
  #allocation1 [shape = 'u32[144,128]{1,0:T(1,128)}', space=vmem, size = 0x12000, scoped, tag = 'internal scratch']
  %s0 = inlined_call_operand.vmem [shape: bf16[2,8,320], index: 0, kind: input, shape index: {}]
  %s1 = inlined_call_operand.vmem [shape: f32[8,8], index: 1, kind: input, shape index: {}]
  %s2 = inlined_call_operand.vmem [shape: bf16[8,256], index: 2, kind: input, shape index: {}]
  %s3 = inlined_call_operand.vmem [shape: bf16[16,48], index: 3, kind: input, shape index: {}]
  %s4 = inlined_call_operand.vmem [shape: f32[8,1], index: 4, kind: input, shape index: {}]
  %s5 = inlined_call_operand.vmem [shape: f32[2,8,256], index: 5, kind: output, shape index: {}]
  %s6 = sld [smem:[#allocation0]]
  $region30: #{acblock_forward.1} parent=0
    _
  %s8 = ssub.s32 1, %s6
  %s9 = scalar_select 0, %s8, %s6
  // Predicated region
  $region2: #{acblock_forward.1} parent=0 // pred_check
    _
  $region3: #{acblock_forward.1} parent=0 // pred_check_branch
    %11 = sbr.rel (0) target = $region5
  $region4: #{acblock_forward.1} parent=0 // pred_region
    _
  $region5: #{acblock_forward.1} parent=0 // pred_fallthru
    _
  // Predicated region
  $region6: #{acblock_forward.1} parent=0 // pred_check
    _
  $region7: #{acblock_forward.1} parent=0 // pred_check_branch
    %13 = sbr.rel (0) target = $region9
  $region8: #{acblock_forward.1} parent=0 // pred_region
    _
  $region9: #{acblock_forward.1} parent=0 // pred_fallthru
    _
  // Predicated region
  $region10: #{acblock_forward.1} parent=0 // pred_check
    _
  $region11: #{acblock_forward.1} parent=0 // pred_check_branch
    %15 = sbr.rel (0) target = $region13
  $region12: #{acblock_forward.1} parent=0 // pred_region
    _
  $region13: #{acblock_forward.1} parent=0 // pred_fallthru
    _
  // Predicated region
  $region14: #{acblock_forward.1} parent=0 // pred_check
    _
  $region15: #{acblock_forward.1} parent=0 // pred_check_branch
    %17 = sbr.rel (0) target = $region17
  $region16: #{acblock_forward.1} parent=0 // pred_region
    _
  $region17: #{acblock_forward.1} parent=0 // pred_fallthru
    _
  // Predicated region
  $region18: #{acblock_forward.1} parent=0 // pred_check
    _
  $region19: #{acblock_forward.1} parent=0 // pred_check_branch
    %19 = sbr.rel (0) target = $region21
  $region20: #{acblock_forward.1} parent=0 // pred_region
    _
  $region21: #{acblock_forward.1} parent=0 // pred_fallthru
    _
  %v21 = vld [vmem:[%s0] sm:$0xff]
  %v22 = vld [vmem:[%s0 + $0x8] sm:$0xf]
  %v23 = vld [vmem:[%s0 + $0xc] sm:$0xff]
  %v24 = vld [vmem:[%s0 + $0x14] sm:$0xf]
  %v25 = vunpack.c.l.bf16 %v21
  %v26 = vunpack.c.h.bf16 %v21
  %v27 = vunpack.c.l.bf16 %v22
  %v28 = vunpack.c.l.bf16 %v23
  %v29 = vunpack.c.h.bf16 %v23
  %v30 = vunpack.c.l.bf16 %v24
  %v31 = vld [vmem:[%s1] sm:$0xff]
  %33 = vset.pattern.permute.xlu0 0
  %34 = vperm.xlu0 %33, %v31
  %v35 = vpop.permute.xlu0 %34
  %v37 = vmul.f32 %v25, %v35
  %v38 = vmul.f32 %v26, %v35
  %v39 = vmul.f32 %v27, %v35
  %v40 = vmul.f32 %v28, %v35
  %v41 = vmul.f32 %v29, %v35
  %v42 = vmul.f32 %v30, %v35
  %43 = vset.pattern.permute.xlu0 1
  %44 = vperm.xlu0 %43, %v31
  %v45 = vpop.permute.xlu0 %44
  %v47 = vadd.f32 %v37, %v45
  %v48 = vadd.f32 %v38, %v45
  %v49 = vadd.f32 %v39, %v45
  %v50 = vadd.f32 %v40, %v45
  %v51 = vadd.f32 %v41, %v45
  %v52 = vadd.f32 %v42, %v45
  %v53 = vmax.f32 %v47, 0.0
  %v54 = vmax.f32 %v48, 0.0
  %v55 = vmax.f32 %v49, 0.0
  %v56 = vmax.f32 %v50, 0.0
  %v57 = vmax.f32 %v51, 0.0
  %v58 = vmax.f32 %v52, 0.0
  %v59 = vpack.c.bf16 %v53, %v53
  %v60 = vpack.c.bf16 %v54, %v54
  %v61 = vpack.c.bf16 %v55, %v55
  %v62 = vpack.c.bf16 %v56, %v56
  %v63 = vpack.c.bf16 %v57, %v57
  %v64 = vpack.c.bf16 %v58, %v58
  %65 = vset.pattern.permute.xlu0 2
  %66 = vperm.xlu0 %65, %v31
  %v67 = vpop.permute.xlu0 %66
  %v69 = vmul.f32 %v25, %v67
  %v70 = vmul.f32 %v26, %v67
  %v71 = vmul.f32 %v27, %v67
  %v72 = vmul.f32 %v28, %v67
  %v73 = vmul.f32 %v29, %v67
  %v74 = vmul.f32 %v30, %v67
  %75 = vset.pattern.permute.xlu0 3
  %76 = vperm.xlu0 %75, %v31
  %v77 = vpop.permute.xlu0 %76
  %v79 = vadd.f32 %v69, %v77
  %v80 = vadd.f32 %v70, %v77
  %v81 = vadd.f32 %v71, %v77
  %v82 = vadd.f32 %v72, %v77
  %v83 = vadd.f32 %v73, %v77
  %v84 = vadd.f32 %v74, %v77
  %v85 = vmax.f32 %v79, 0.0
  %v86 = vmax.f32 %v80, 0.0
  %v87 = vmax.f32 %v81, 0.0
  %v88 = vmax.f32 %v82, 0.0
  %v89 = vmax.f32 %v83, 0.0
  %v90 = vmax.f32 %v84, 0.0
  %v91 = vpack.c.bf16 %v85, %v85
  %v92 = vpack.c.bf16 %v86, %v86
  %v93 = vpack.c.bf16 %v87, %v87
  %v94 = vpack.c.bf16 %v88, %v88
  %v95 = vpack.c.bf16 %v89, %v89
  %v96 = vpack.c.bf16 %v90, %v90
  %v97 = vld [vmem:[%s2] sm:$0xff]
  %v99 = vunpack.c.l.b16 %v97
  %v100 = vunpack.c.h.b16 %v97
  %v101 = vpack.c.b16 %v99, %v99
  %v102 = vpack.c.b16 %v100, %v100
  %v104 = vpack.i.b16 %v101, %v101
  %v106 = vlaneseq
  %v107 = vshrl.u32 %v106, 7
  %v108 = vsub.s32 0, %v107
  %v109 = vrot.slane %v104, %v108
  %v111 = vpack.i.b16 %v102, %v102
  %v113 = vlaneseq
  %v114 = vshrl.u32 %v113, 7
  %v115 = vsub.s32 0, %v114
  %v116 = vrot.slane %v111, %v115
  %v117 = vmul.bf16 %v59, %v109
  %v118 = vmul.bf16 %v60, %v116
  %v119 = vmul.bf16 %v62, %v109
  %v120 = vmul.bf16 %v63, %v116
  %124 = vrot.lane.b32.xlu0 %v59, 96
  %v125 = vpop.permute.xlu0 %124
  %126 = vrot.lane.b32.xlu0 %v60, 96
  %v127 = vpop.permute.xlu0 %126
  %128 = vrot.lane.b32.xlu0 %v61, 96
  %v129 = vpop.permute.xlu0 %128
  %vm130 = vcmask 785408
  %v131 = vsel %vm130, %v125, %v127
  %v132 = vsel %vm130, %v127, %v129
  %136 = vrot.lane.b32.xlu0 %v62, 96
  %v137 = vpop.permute.xlu0 %136
  %138 = vrot.lane.b32.xlu0 %v63, 96
  %v139 = vpop.permute.xlu0 %138
  %140 = vrot.lane.b32.xlu0 %v64, 96
  %v141 = vpop.permute.xlu0 %140
  %v142 = vsel %vm130, %v137, %v139
  %v143 = vsel %vm130, %v139, %v141
  %v144 = vshrl.u32 %v101, 16
  %v145 = vpack.i.b16 %v144, %v144
  %v147 = vlaneseq
  %v148 = vshrl.u32 %v147, 7
  %v149 = vsub.s32 0, %v148
  %v150 = vrot.slane %v145, %v149
  %v151 = vshrl.u32 %v102, 16
  %v152 = vpack.i.b16 %v151, %v151
  %v154 = vlaneseq
  %v155 = vshrl.u32 %v154, 7
  %v156 = vsub.s32 0, %v155
  %v157 = vrot.slane %v152, %v156
  %160 = vrot.lane.b32.xlu0 %v150, 64
  %v161 = vpop.permute.xlu0 %160
  %162 = vrot.lane.b32.xlu0 %v157, 64
  %v163 = vpop.permute.xlu0 %162
  %vm164 = vcmask 523264
  %v165 = vsel %vm164, %v161, %v163
  %v169 = vmul.bf16 %v59, %v161
  %v170 = vmul.bf16 %v60, %v165
  %v171 = vmul.bf16 %v61, %v163
  %v172 = vmul.bf16 %v62, %v161
  %v173 = vmul.bf16 %v63, %v165
  %v174 = vmul.bf16 %v64, %v163
  %178 = vrot.lane.b32.xlu0 %v169, 64
  %v179 = vpop.permute.xlu0 %178
  %180 = vrot.lane.b32.xlu0 %v170, 64
  %v181 = vpop.permute.xlu0 %180
  %182 = vrot.lane.b32.xlu0 %v171, 64
  %v183 = vpop.permute.xlu0 %182
  %v184 = vsel %vm164, %v179, %v181
  %v185 = vsel %vm164, %v181, %v183
  %189 = vrot.lane.b32.xlu0 %v172, 64
  %v190 = vpop.permute.xlu0 %189
  %191 = vrot.lane.b32.xlu0 %v173, 64
  %v192 = vpop.permute.xlu0 %191
  %193 = vrot.lane.b32.xlu0 %v174, 64
  %v194 = vpop.permute.xlu0 %193
  %v195 = vsel %vm164, %v190, %v192
  %v196 = vsel %vm164, %v192, %v194
  %v197 = vlaneseq
  %v198 = vshrl.u32 %v197, 7
  %v199 = vsub.s32 1, %v198
  %v200 = vrot.slane %v104, %v199
  %v201 = vlaneseq
  %v202 = vshrl.u32 %v201, 7
  %v203 = vsub.s32 1, %v202
  %v204 = vrot.slane %v111, %v203
  %207 = vrot.lane.b32.xlu0 %v200, 30
  %v208 = vpop.permute.xlu0 %207
  %209 = vrot.lane.b32.xlu0 %v204, 30
  %v210 = vpop.permute.xlu0 %209
  %vm211 = vcmask 244736
  %v212 = vsel %vm211, %v208, %v210
  %v216 = vmul.bf16 %v91, %v208
  %v217 = vmul.bf16 %v92, %v212
  %v218 = vmul.bf16 %v93, %v210
  %v219 = vmul.bf16 %v94, %v208
  %v220 = vmul.bf16 %v95, %v212
  %v221 = vmul.bf16 %v96, %v210
  %225 = vrot.lane.b32.xlu0 %v216, 98
  %v226 = vpop.permute.xlu0 %225
  %227 = vrot.lane.b32.xlu0 %v217, 98
  %v228 = vpop.permute.xlu0 %227
  %229 = vrot.lane.b32.xlu0 %v218, 98
  %v230 = vpop.permute.xlu0 %229
  %vm231 = vcmask 801792
  %v232 = vsel %vm231, %v226, %v228
  %v233 = vsel %vm231, %v228, %v230
  %237 = vrot.lane.b32.xlu0 %v219, 98
  %v238 = vpop.permute.xlu0 %237
  %239 = vrot.lane.b32.xlu0 %v220, 98
  %v240 = vpop.permute.xlu0 %239
  %241 = vrot.lane.b32.xlu0 %v221, 98
  %v242 = vpop.permute.xlu0 %241
  %v243 = vsel %vm231, %v238, %v240
  %v244 = vsel %vm231, %v240, %v242
  %248 = vrot.lane.b32.xlu0 %v91, 96
  %v249 = vpop.permute.xlu0 %248
  %250 = vrot.lane.b32.xlu0 %v92, 96
  %v251 = vpop.permute.xlu0 %250
  %252 = vrot.lane.b32.xlu0 %v93, 96
  %v253 = vpop.permute.xlu0 %252
  %v254 = vsel %vm130, %v249, %v251
  %v255 = vsel %vm130, %v251, %v253
  %259 = vrot.lane.b32.xlu0 %v94, 96
  %v260 = vpop.permute.xlu0 %259
  %261 = vrot.lane.b32.xlu0 %v95, 96
  %v262 = vpop.permute.xlu0 %261
  %263 = vrot.lane.b32.xlu0 %v96, 96
  %v264 = vpop.permute.xlu0 %263
  %v265 = vsel %vm130, %v260, %v262
  %v266 = vsel %vm130, %v262, %v264
  %v267 = vlaneseq
  %v268 = vshrl.u32 %v267, 7
  %v269 = vsub.s32 1, %v268
  %v270 = vrot.slane %v145, %v269
  %v271 = vlaneseq
  %v272 = vshrl.u32 %v271, 7
  %v273 = vsub.s32 1, %v272
  %v274 = vrot.slane %v152, %v273
  %277 = vrot.lane.b32.xlu0 %v270, 34
  %v278 = vpop.permute.xlu0 %277
  %279 = vrot.lane.b32.xlu0 %v274, 34
  %v280 = vpop.permute.xlu0 %279
  %vm281 = vcmask 277504
  %v282 = vsel %vm281, %v278, %v280
  %v286 = vmul.bf16 %v91, %v278
  %v287 = vmul.bf16 %v92, %v282
  %v288 = vmul.bf16 %v93, %v280
  %v289 = vmul.bf16 %v94, %v278
  %v290 = vmul.bf16 %v95, %v282
  %v291 = vmul.bf16 %v96, %v280
  %295 = vrot.lane.b32.xlu0 %v286, 94
  %v296 = vpop.permute.xlu0 %295
  %297 = vrot.lane.b32.xlu0 %v287, 94
  %v298 = vpop.permute.xlu0 %297
  %299 = vrot.lane.b32.xlu0 %v288, 94
  %v300 = vpop.permute.xlu0 %299
  %vm301 = vcmask 769024
  %v302 = vsel %vm301, %v296, %v298
  %v303 = vsel %vm301, %v298, %v300
  %307 = vrot.lane.b32.xlu0 %v289, 94
  %v308 = vpop.permute.xlu0 %307
  %309 = vrot.lane.b32.xlu0 %v290, 94
  %v310 = vpop.permute.xlu0 %309
  %311 = vrot.lane.b32.xlu0 %v291, 94
  %v312 = vpop.permute.xlu0 %311
  %v313 = vsel %vm301, %v308, %v310
  %v314 = vsel %vm301, %v310, %v312
  %v315 = vrot.slane %v131, 4
  %v316 = vrot.slane %v132, 4
  %v317 = vrot.slane %v142, 4
  %v318 = vrot.slane %v143, 4
  %v319 = vrot.slane %v232, 4
  %v320 = vrot.slane %v233, 4
  %v321 = vrot.slane %v243, 4
  %v322 = vrot.slane %v244, 4
  %v323 = vrot.slane %v302, 4
  %v324 = vrot.slane %v303, 4
  %v325 = vrot.slane %v313, 4
  %v326 = vrot.slane %v314, 4
  %vm327 = vcmask 1043456
  %v330 = vsel %vm327, %v117, %v315
  %v334 = vsel %vm327, %v118, %v316
  %v338 = vsel %vm327, %v119, %v317
  %v342 = vsel %vm327, %v120, %v318
  %v346 = vsel %vm327, %v184, %v319
  %v350 = vsel %vm327, %v185, %v320
  %v354 = vsel %vm327, %v195, %v321
  %v358 = vsel %vm327, %v196, %v322
  %v362 = vsel %vm327, %v254, %v323
  %v366 = vsel %vm327, %v255, %v324
  %v370 = vsel %vm327, %v265, %v325
  %v374 = vsel %vm327, %v266, %v326
  %v376 = vld [vmem:[%s3] sm:$0xf]
  %v377 = vld [vmem:[%s3 + $0x4] sm:$0xf]
  %v380 = vunpack.c.l.b16 %v376
  %v381 = vunpack.c.l.b16 %v377
  %v382 = vpack.c.b16 %v381, %v380
  %vm383 = vcmask 392192
  %v385 = vsel %vm383, %v382, 0
  %387 = vmatprep.subr.bf16.mxu0 0
  %388 = vmatpush1.bf16.msra.mxu0 0
  %389 = vmatprep.subr.bf16.mxu0 0
  %390 = vmatpush1.bf16.msra.mxu0 0
  %391 = vmatprep.subr.bf16.mxu0 0
  %392 = vmatpush1.bf16.msra.mxu0 0
  %393 = vmatprep.subr.bf16.mxu0 0
  %394 = vmatpush1.bf16.msra.mxu0 0
  %395 = vmatprep.subr.bf16.mxu0 0
  %396 = vmatpush1.bf16.msra.mxu0 0
  %397 = vmatprep.subr.bf16.mxu0 %v366
  %398 = vmatpush1.bf16.msra.mxu0 %v362
  %399 = vmatprep.subr.bf16.mxu0 %v350
  %400 = vmatpush1.bf16.msra.mxu0 %v346
  %401 = vmatprep.subr.bf16.mxu0 %v334
  %402 = vmatpush1.bf16.msra.mxu0 %v330
  %403 = vmatprep.subr.bf16.mxu0 0
  %404 = vmatpush2.bf16.msra.mxu0 0
  %405 = vmatprep.subr.bf16.mxu0 0
  %406 = vmatpush2.bf16.msra.mxu0 0
  %407 = vmatprep.subr.bf16.mxu0 0
  %408 = vmatpush2.bf16.msra.mxu0 0
  %409 = vmatprep.subr.bf16.mxu0 0
  %410 = vmatpush2.bf16.msra.mxu0 0
  %411 = vmatprep.subr.bf16.mxu0 0
  %412 = vmatpush2.bf16.msra.mxu0 0
  %413 = vmatprep.subr.bf16.mxu0 0
  %414 = vmatpush2.bf16.msra.mxu0 0
  %415 = vmatprep.subr.bf16.mxu0 0
  %416 = vmatpush2.bf16.msra.mxu0 0
  %417 = vmatprep.subr.bf16.mxu0 0
  %418 = vmatpush2.bf16.msra.mxu0 0
  %419 = vmatprep.mubr.bf16.mxu0 0
  %420 = vmatmul.mubr.bf16.gmra.mxu0 %v385
  %v421 = vpop.f32.mrf.mxu0
  %v422 = vadd.f32 0.0, %v421
  %v423 = vpop.f32.mrf.mxu0
  %v424 = vadd.f32 0.0, %v423
  %v425 = vpop.f32.mrf.mxu0
  %v426 = vpop.f32.mrf.mxu0
  %427 = vdwg.mxu0
  %428 = vmatprep.subr.bf16.mxu0 0
  %429 = vmatpush1.bf16.msra.mxu0 0
  %430 = vmatprep.subr.bf16.mxu0 0
  %431 = vmatpush1.bf16.msra.mxu0 0
  %432 = vmatprep.subr.bf16.mxu0 0
  %433 = vmatpush1.bf16.msra.mxu0 0
  %434 = vmatprep.subr.bf16.mxu0 0
  %435 = vmatpush1.bf16.msra.mxu0 0
  %436 = vmatprep.subr.bf16.mxu0 0
  %437 = vmatpush1.bf16.msra.mxu0 0
  %438 = vmatprep.subr.bf16.mxu0 %v374
  %439 = vmatpush1.bf16.msra.mxu0 %v370
  %440 = vmatprep.subr.bf16.mxu0 %v358
  %441 = vmatpush1.bf16.msra.mxu0 %v354
  %442 = vmatprep.subr.bf16.mxu0 %v342
  %443 = vmatpush1.bf16.msra.mxu0 %v338
  %444 = vmatprep.subr.bf16.mxu0 0
  %445 = vmatpush2.bf16.msra.mxu0 0
  %446 = vmatprep.subr.bf16.mxu0 0
  %447 = vmatpush2.bf16.msra.mxu0 0
  %448 = vmatprep.subr.bf16.mxu0 0
  %449 = vmatpush2.bf16.msra.mxu0 0
  %450 = vmatprep.subr.bf16.mxu0 0
  %451 = vmatpush2.bf16.msra.mxu0 0
  %452 = vmatprep.subr.bf16.mxu0 0
  %453 = vmatpush2.bf16.msra.mxu0 0
  %454 = vmatprep.subr.bf16.mxu0 0
  %455 = vmatpush2.bf16.msra.mxu0 0
  %456 = vmatprep.subr.bf16.mxu0 0
  %457 = vmatpush2.bf16.msra.mxu0 0
  %458 = vmatprep.subr.bf16.mxu0 0
  %459 = vmatpush2.bf16.msra.mxu0 0
  %460 = vmatprep.mubr.bf16.mxu0 0
  %461 = vmatmul.mubr.bf16.gmra.mxu0 %v385
  %v462 = vpop.f32.mrf.mxu0
  %v463 = vadd.f32 0.0, %v462
  %v464 = vpop.f32.mrf.mxu0
  %v465 = vadd.f32 0.0, %v464
  %v466 = vpop.f32.mrf.mxu0
  %v467 = vpop.f32.mrf.mxu0
  %468 = vdwg.mxu0
  %v469 = vld [vmem:[%s4] sm:$0xff]
  %471 = vset.pattern.permute.xlu0 0
  %472 = vperm.xlu0 %471, %v469
  %v473 = vpop.permute.xlu0 %472
  %v475 = vadd.f32 %v422, %v473
  %v476 = vadd.f32 %v424, %v473
  %v477 = vadd.f32 %v463, %v473
  %v478 = vadd.f32 %v465, %v473
  %479 = vst [vmem:[%s5] sm:$0xff] %v475
  %480 = vst [vmem:[%s5 + $0x8] sm:$0xff] %v476
  %s481 = scalar_lea.vmem %s5, 16
  %482 = vst [vmem:[%s481] sm:$0xff] %v477
  %483 = vst [vmem:[%s481 + $0x8] sm:$0xff] %v478
  // Predicated region
  $region22: #{acblock_forward.1} parent=0 // pred_check
    _
  $region23: #{acblock_forward.1} parent=0 // pred_check_branch
    %485 = sbr.rel (0) target = $region25
  $region24: #{acblock_forward.1} parent=0 // pred_region
    _
  $region25: #{acblock_forward.1} parent=0 // pred_fallthru
    _
  // Predicated region
  $region26: #{acblock_forward.1} parent=0 // pred_check
    _
  $region27: #{acblock_forward.1} parent=0 // pred_check_branch
    %487 = sbr.rel (0) target = $region29
  $region28: #{acblock_forward.1} parent=0 // pred_region
    _
  $region29: #{acblock_forward.1} parent=0 // pred_fallthru
    _

</llo_original>
